<compile_context>
chip_gen: v7x
topology: tpu7x:2x2x1
jax: 0.10.0
libtpu: 0.0.40
codegen_flags: <defaults>
</compile_context>

<pallas_src>
import functools
import math

import jax
import jax.numpy as jnp
from jax import lax
from jax.experimental import pallas as pl
from jax.experimental.pallas import tpu as pltpu


def _round_up(n, m):
    return ((n + m - 1) // m) * m


def _pad_axis(a, axis, target):
    pad = target - a.shape[axis]
    if pad == 0:
        return a
    widths = [(0, 0)] * a.ndim
    widths[axis] = (0, pad)
    return jnp.pad(a, widths)


def _adapter_kernel(x_ref, wd_ref, bd_ref, wu_ref, bu_ref, o_ref):
    # x_ref:  (TM, in_pad)
    # wd_ref: (hid_pad, in_pad)   -- PyTorch nn.Linear layout (out_features, in_features)
    # bd_ref: (1, hid_pad)
    # wu_ref: (out_pad, hid_pad)
    # bu_ref: (1, out_pad)
    # o_ref:  (TM, out_pad)
    x = x_ref[...]
    # h = x @ W_down^T : contract x's last axis with W_down's last axis.  No
    # materialized transpose — the MXU handles the transposed operand natively.
    h = lax.dot_general(
        x, wd_ref[...],
        dimension_numbers=(((1,), (1,)), ((), ())),
        preferred_element_type=jnp.float32,
    )
    h = h + bd_ref[...].astype(jnp.float32)
    # y = h @ W_up^T
    y = lax.dot_general(
        h.astype(wu_ref.dtype), wu_ref[...],
        dimension_numbers=(((1,), (1,)), ((), ())),
        preferred_element_type=jnp.float32,
    )
    y = y + bu_ref[...].astype(jnp.float32)
    o_ref[...] = y.astype(o_ref.dtype)


@functools.partial(jax.jit, static_argnames=("tile_m",))
def shared_adapter(x, w_down, b_down, w_up, b_up, *, tile_m=256):
    """Pallas implementation of SharedAdapter.forward.

    x       : (..., in_dim)
    w_down  : (hidden_dim, in_dim)   -- PyTorch nn.Linear weight layout
    b_down  : (hidden_dim,)
    w_up    : (out_dim, hidden_dim)
    b_up    : (out_dim,)
    returns : (..., out_dim)
    """
    in_dim = x.shape[-1]
    hidden_dim = w_down.shape[0]
    out_dim = w_up.shape[0]

    lead_shape = x.shape[:-1]
    m = math.prod(lead_shape) if lead_shape else 1

    # --- lane-dense padding of feature dims (exact: zero pads, sliced off) ---
    in_pad = _round_up(in_dim, 128)
    hid_pad = _round_up(hidden_dim, 128)
    out_pad = _round_up(out_dim, 128)

    x2 = _pad_axis(x.reshape(m, in_dim), 1, in_pad)
    wd = _pad_axis(_pad_axis(jnp.asarray(w_down), 0, hid_pad), 1, in_pad)       # (hid_pad, in_pad)
    bd = _pad_axis(jnp.asarray(b_down).reshape(1, hidden_dim), 1, hid_pad)      # (1, hid_pad)
    wu = _pad_axis(_pad_axis(jnp.asarray(w_up), 0, out_pad), 1, hid_pad)        # (out_pad, hid_pad)
    bu = _pad_axis(jnp.asarray(b_up).reshape(1, out_dim), 1, out_pad)           # (1, out_pad)

    # --- M tiling: big tiles by default; pad M instead of asserting ---
    tile_m = max(8, _round_up(tile_m, 8))
    m8 = _round_up(m, 8)
    if m8 <= tile_m and m > 8:
        # Small M: split into two tiles so a 2-TC chip (v7x) can shard the grid.
        tm = max(8, _round_up(-(-m // 2), 8))
    else:
        tm = min(tile_m, m8)
    m_pad = _round_up(m, tm)
    x2 = _pad_axis(x2, 0, m_pad)

    grid = (m_pad // tm,)

    # --- explicit VMEM budget: double-buffered x/out tiles + resident weights ---
    itemsize = x2.dtype.itemsize
    tile_bytes = 2 * tm * (in_pad + out_pad) * itemsize          # 2x: double buffer
    w_bytes = (hid_pad * in_pad + out_pad * hid_pad + hid_pad + out_pad) * wd.dtype.itemsize
    # Clamp: at least 32 MiB, and stay safely under v7x's 64 MiB physical VMEM.
    vmem_limit = int(min(56 * 1024 * 1024,
                         max(32 * 1024 * 1024, 2 * (tile_bytes + w_bytes))))

    # Grid-invariant operands: single-buffer (fetched once, stay resident).
    resident = dict(pipeline_mode=pl.Buffered(1))

    flops = 2 * m_pad * (in_pad * hid_pad + hid_pad * out_pad)
    bytes_accessed = (m_pad * (in_pad + out_pad) * itemsize
                      + (hid_pad * in_pad + out_pad * hid_pad) * wd.dtype.itemsize)

    out2 = pl.pallas_call(
        _adapter_kernel,
        out_shape=jax.ShapeDtypeStruct((m_pad, out_pad), x.dtype),
        grid_spec=pltpu.PrefetchScalarGridSpec(
            num_scalar_prefetch=0,
            grid=grid,
            in_specs=[
                pl.BlockSpec((tm, in_pad), lambda i: (i, 0)),                    # x tile
                pl.BlockSpec((hid_pad, in_pad), lambda i: (0, 0), **resident),   # W_down (resident)
                pl.BlockSpec((1, hid_pad), lambda i: (0, 0), **resident),        # b_down
                pl.BlockSpec((out_pad, hid_pad), lambda i: (0, 0), **resident),  # W_up (resident)
                pl.BlockSpec((1, out_pad), lambda i: (0, 0), **resident),        # b_up
            ],
            out_specs=pl.BlockSpec((tm, out_pad), lambda i: (i, 0)),
        ),
        compiler_params=pltpu.CompilerParams(
            dimension_semantics=("parallel",),
            vmem_limit_bytes=vmem_limit,
        ),
        cost_estimate=pl.CostEstimate(
            flops=flops, transcendentals=0, bytes_accessed=bytes_accessed),
    )(x2, wd, bd, wu, bu)

    out2 = out2[:m, :out_dim]
    return out2.reshape(*lead_shape, out_dim)


def _init_params(key, in_dim, hidden_dim, out_dim, dtype=jnp.float32):
    """Deterministic init mimicking nn.Linear's uniform(-1/sqrt(fan_in), 1/sqrt(fan_in))."""
    k1, k2, k3, k4 = jax.random.split(key, 4)
    bd_lim = 1.0 / (in_dim ** 0.5)
    bu_lim = 1.0 / (hidden_dim ** 0.5)
    w_down = jax.random.uniform(k1, (hidden_dim, in_dim), dtype, -bd_lim, bd_lim)
    b_down = jax.random.uniform(k2, (hidden_dim,), dtype, -bd_lim, bd_lim)
    w_up = jax.random.uniform(k3, (out_dim, hidden_dim), dtype, -bu_lim, bu_lim)
    b_up = jax.random.uniform(k4, (out_dim,), dtype, -bu_lim, bu_lim)
    return w_down, b_down, w_up, b_up


if __name__ == "__main__":
    # Small shapes consistent with an adapter applied to a ViT token stream:
    # x: (batch=2, seq=8, in_dim=32), hidden_dim=16, out_dim=32.
    batch, seq, in_dim, hidden_dim, out_dim = 2, 8, 32, 16, 32

    key = jax.random.PRNGKey(0)
    kx, kp = jax.random.split(key)
    x = jax.random.normal(kx, (batch, seq, in_dim), jnp.float32)
    w_down, b_down, w_up, b_up = _init_params(kp, in_dim, hidden_dim, out_dim)

    y = shared_adapter(x, w_down, b_down, w_up, b_up)
    y = jax.block_until_ready(y)

    # Reference check in plain JAX (same math as the PyTorch forward).
    h_ref = x @ w_down.T + b_down
    y_ref = h_ref @ w_up.T + b_up
    assert y.shape == (batch, seq, out_dim)
    assert jnp.allclose(y, y_ref, atol=1e-5, rtol=1e-5)

    print("KERNEL_OK")
</pallas_src>

<mosaic_0001>
module attributes {stable_mosaic.version = 11 : i64} {
  func.func @_adapter_kernel(%arg0: i32, %arg1: memref<8x128xf32, #tpu.memory_space<vmem>>, %arg2: memref<128x128xf32, #tpu.memory_space<vmem>>, %arg3: memref<1x128xf32, #tpu.memory_space<vmem>>, %arg4: memref<128x128xf32, #tpu.memory_space<vmem>>, %arg5: memref<1x128xf32, #tpu.memory_space<vmem>>, %arg6: memref<8x128xf32, #tpu.memory_space<vmem>>) attributes {dimension_semantics = [#tpu.dimension_semantics<parallel>], iteration_bounds = array<i64: 2>, scalar_prefetch = 0 : i64, scratch_operands = 0 : i64, tpu.core_type = #tpu.core_type<tc>, window_params = [{transform_indices = @transform_0, window_bounds = array<i64: 8, 128>}, {pipeline_mode = #tpu.pipeline_mode<synchronous>, transform_indices = @transform_1, window_bounds = array<i64: 128, 128>}, {pipeline_mode = #tpu.pipeline_mode<synchronous>, transform_indices = @transform_2, window_bounds = array<i64: 1, 128>}, {pipeline_mode = #tpu.pipeline_mode<synchronous>, transform_indices = @transform_3, window_bounds = array<i64: 128, 128>}, {pipeline_mode = #tpu.pipeline_mode<synchronous>, transform_indices = @transform_4, window_bounds = array<i64: 1, 128>}, {transform_indices = @transform_5, window_bounds = array<i64: 8, 128>}]} {
    %c0 = arith.constant 0 : index
    %c0_0 = arith.constant 0 : index
    %0 = vector.load %arg1[%c0, %c0_0] : memref<8x128xf32, #tpu.memory_space<vmem>>, vector<8x128xf32>
    %c0_1 = arith.constant 0 : index
    %c0_2 = arith.constant 0 : index
    %1 = vector.load %arg2[%c0_1, %c0_2] : memref<128x128xf32, #tpu.memory_space<vmem>>, vector<128x128xf32>
    %cst = arith.constant dense<0.000000e+00> : vector<8x128xf32>
    %2 = tpu.matmul %0, %1, %cst {dimension_numbers = #tpu.dot_dimension_numbers<[1], [1], [0], [0], [0, 0, 1, 0], [], []>} : vector<8x128xf32>, vector<128x128xf32>, vector<8x128xf32> -> vector<8x128xf32>
    %c0_3 = arith.constant 0 : index
    %c0_4 = arith.constant 0 : index
    %3 = vector.load %arg3[%c0_3, %c0_4] : memref<1x128xf32, #tpu.memory_space<vmem>>, vector<1x128xf32>
    %4 = vector.broadcast %3 : vector<1x128xf32> to vector<8x128xf32>
    %5 = arith.addf %2, %4 : vector<8x128xf32>
    %c0_5 = arith.constant 0 : index
    %c0_6 = arith.constant 0 : index
    %6 = vector.load %arg4[%c0_5, %c0_6] : memref<128x128xf32, #tpu.memory_space<vmem>>, vector<128x128xf32>
    %cst_7 = arith.constant dense<0.000000e+00> : vector<8x128xf32>
    %7 = tpu.matmul %5, %6, %cst_7 {dimension_numbers = #tpu.dot_dimension_numbers<[1], [1], [0], [0], [0, 0, 1, 0], [], []>} : vector<8x128xf32>, vector<128x128xf32>, vector<8x128xf32> -> vector<8x128xf32>
    %c0_8 = arith.constant 0 : index
    %c0_9 = arith.constant 0 : index
    %8 = vector.load %arg5[%c0_8, %c0_9] : memref<1x128xf32, #tpu.memory_space<vmem>>, vector<1x128xf32>
    %9 = vector.broadcast %8 : vector<1x128xf32> to vector<8x128xf32>
    %10 = arith.addf %7, %9 : vector<8x128xf32>
    %c0_10 = arith.constant 0 : index
    %c0_11 = arith.constant 0 : index
    %11 = vector.load %arg6[%c0_10, %c0_11] : memref<8x128xf32, #tpu.memory_space<vmem>>, vector<8x128xf32>
    tpu.vector_store %arg6[%c0_10, %c0_11], %10 {strides = array<i32>} : memref<8x128xf32, #tpu.memory_space<vmem>>, vector<8x128xf32>,
    return
  }
  func.func @transform_0(%arg0: i32) -> (i32, i32) {
    %c0_i32 = arith.constant 0 : i32
    %c0_i32_0 = arith.constant 0 : i32
    return %arg0, %c0_i32 : i32, i32
  }
  func.func @transform_1(%arg0: i32) -> (i32, i32) {
    %c0_i32 = arith.constant 0 : i32
    %c0_i32_0 = arith.constant 0 : i32
    %c0_i32_1 = arith.constant 0 : i32
    return %c0_i32, %c0_i32_0 : i32, i32
  }
  func.func @transform_2(%arg0: i32) -> (i32, i32) {
    %c0_i32 = arith.constant 0 : i32
    %c0_i32_0 = arith.constant 0 : i32
    %c0_i32_1 = arith.constant 0 : i32
    return %c0_i32, %c0_i32_0 : i32, i32
  }
  func.func @transform_3(%arg0: i32) -> (i32, i32) {
    %c0_i32 = arith.constant 0 : i32
    %c0_i32_0 = arith.constant 0 : i32
    %c0_i32_1 = arith.constant 0 : i32
    return %c0_i32, %c0_i32_0 : i32, i32
  }
  func.func @transform_4(%arg0: i32) -> (i32, i32) {
    %c0_i32 = arith.constant 0 : i32
    %c0_i32_0 = arith.constant 0 : i32
    %c0_i32_1 = arith.constant 0 : i32
    return %c0_i32, %c0_i32_0 : i32, i32
  }
  func.func @transform_5(%arg0: i32) -> (i32, i32) {
    %c0_i32 = arith.constant 0 : i32
    %c0_i32_0 = arith.constant 0 : i32
    return %arg0, %c0_i32 : i32, i32
  }
}

</mosaic_0001>

<llo_original>
// kernel: shared_adapter.1
$region0: #{shared_adapter.1}
  #allocation0 [shape = 'u32[]', space=smem, size = 0x4, offset = 0x4, fixed_abs, tag = 'smem constant byte address 0x4 - core index']
  #allocation1 [shape = 'u32[144,128]{1,0:T(1,128)}', space=vmem, size = 0x12000, scoped, tag = 'internal scratch']
  %s0 = inlined_call_operand.vmem [shape: f32[16,128], index: 0, kind: input, shape index: {}]
  %s1 = inlined_call_operand.vmem [shape: f32[128,128], index: 1, kind: input, shape index: {}]
  %s2 = inlined_call_operand.vmem [shape: f32[1,128], index: 2, kind: input, shape index: {}]
  %s3 = inlined_call_operand.vmem [shape: f32[128,128], index: 3, kind: input, shape index: {}]
  %s4 = inlined_call_operand.vmem [shape: f32[1,128], index: 4, kind: input, shape index: {}]
  %s5 = inlined_call_operand.vmem [shape: f32[16,128], index: 5, kind: output, shape index: {}]
  %s6 = sld [smem:[#allocation0]]
  $region53: #{shared_adapter.1} parent=0
    _
  %s8 = ssub.s32 1, %s6
  %s9 = scalar_select 0, %s8, %s6
  loop: start=0, step=1, limit=4
  $region2: #{shared_adapter.1} parent=0 // loop_pre_header
    _
  $region3: #{shared_adapter.1} parent=0 // loop_header
    %s11 = sphi 0, %s15
    %p12 = scmp.ge.s32.totalorder %s11, 4
    %s21 = sphi 0, %s23
    %s24 = sphi 0, %s21
    %s25 = sphi 0, %s24
    %s41 = sphi 0, %s25
    %s45 = sphi 0, %s45
    %s47 = sphi 0, %s45
    %s48 = sphi 0, %s47
    %s62 = sphi 0, %s48
    %s66 = sphi 0, %s66
    %s68 = sphi 0, %s66
    %s69 = sphi 0, %s68
    %s83 = sphi 0, %s69
    %s87 = sphi 0, %s87
    %s89 = sphi 0, %s87
    %s90 = sphi 0, %s89
    %s104 = sphi 0, %s90
    %s108 = sphi 0, %s108
    %s110 = sphi 0, %s108
    %s111 = sphi 0, %s110
    %s125 = sphi 0, %s111
    %s131 = sphi 0, %s133
    %s134 = sphi 0, %s131
    %s135 = sphi 0, %s134
    %s151 = sphi 0, %s135
  $region4: #{shared_adapter.1} parent=0 // loop_header_branch
    %14 = sbr.rel (%p12) target = $region8
  $region5: #{shared_adapter.1} parent=0 // loop_body
    %s16 = ssub.s32 %s11, 1
    %s17 = ssub.s32 %s11, 2
    %s18 = sadd.s32 %s11, 1
    %s19 = ssub.s32 %s11, %s18
    %p20 = scmp.eq.s32.totalorder %s19, 0
    %s22 = sadd.s32 %s21, 1
    %s23 = scalar_select %p20, %s21, %s22
    %p26 = pneg %p20
    %p27 = scmp.eq.s32.totalorder %s11, 1
    %p28 = por %p26, %p27
    %p29 = scmp.ne.s32.totalorder %s21, %s24
    %p30 = scmp.eq.s32.totalorder %s11, 0
    %p31 = por %p29, %p30
    %p32 = scmp.ne.s32.totalorder %s21, %s24
    %p33 = scmp.eq.s32.totalorder %s16, 1
    %p34 = por %p32, %p33
    %p35 = scmp.ne.s32.totalorder %s24, %s25
    %p36 = scmp.eq.s32.totalorder %s16, 0
    %p37 = por %p35, %p36
    %p38 = scmp.ne.s32.totalorder %s24, %s25
    %p39 = scmp.eq.s32.totalorder %s17, 1
    %p40 = por %p38, %p39
    %p42 = scmp.ne.s32.totalorder %s25, %s41
    %p43 = scmp.eq.s32.totalorder %s17, 0
    %p44 = por %p42, %p43
    %s46 = sadd.s32 %s45, 1
    %p49 = scmp.eq.s32.totalorder %s11, 1
    %p50 = scmp.ne.s32.totalorder %s45, %s47
    %p51 = scmp.eq.s32.totalorder %s11, 0
    %p52 = por %p50, %p51
    %p53 = scmp.ne.s32.totalorder %s45, %s47
    %p54 = scmp.eq.s32.totalorder %s16, 1
    %p55 = por %p53, %p54
    %p56 = scmp.ne.s32.totalorder %s47, %s48
    %p57 = scmp.eq.s32.totalorder %s16, 0
    %p58 = por %p56, %p57
    %p59 = scmp.ne.s32.totalorder %s47, %s48
    %p60 = scmp.eq.s32.totalorder %s17, 1
    %p61 = por %p59, %p60
    %p63 = scmp.ne.s32.totalorder %s48, %s62
    %p64 = scmp.eq.s32.totalorder %s17, 0
    %p65 = por %p63, %p64
    %s67 = sadd.s32 %s66, 1
    %p70 = scmp.eq.s32.totalorder %s11, 1
    %p71 = scmp.ne.s32.totalorder %s66, %s68
    %p72 = scmp.eq.s32.totalorder %s11, 0
    %p73 = por %p71, %p72
    %p74 = scmp.ne.s32.totalorder %s66, %s68
    %p75 = scmp.eq.s32.totalorder %s16, 1
    %p76 = por %p74, %p75
    %p77 = scmp.ne.s32.totalorder %s68, %s69
    %p78 = scmp.eq.s32.totalorder %s16, 0
    %p79 = por %p77, %p78
    %p80 = scmp.ne.s32.totalorder %s68, %s69
    %p81 = scmp.eq.s32.totalorder %s17, 1
    %p82 = por %p80, %p81
    %p84 = scmp.ne.s32.totalorder %s69, %s83
    %p85 = scmp.eq.s32.totalorder %s17, 0
    %p86 = por %p84, %p85
    %s88 = sadd.s32 %s87, 1
    %p91 = scmp.eq.s32.totalorder %s11, 1
    %p92 = scmp.ne.s32.totalorder %s87, %s89
    %p93 = scmp.eq.s32.totalorder %s11, 0
    %p94 = por %p92, %p93
    %p95 = scmp.ne.s32.totalorder %s87, %s89
    %p96 = scmp.eq.s32.totalorder %s16, 1
    %p97 = por %p95, %p96
    %p98 = scmp.ne.s32.totalorder %s89, %s90
    %p99 = scmp.eq.s32.totalorder %s16, 0
    %p100 = por %p98, %p99
    %p101 = scmp.ne.s32.totalorder %s89, %s90
    %p102 = scmp.eq.s32.totalorder %s17, 1
    %p103 = por %p101, %p102
    %p105 = scmp.ne.s32.totalorder %s90, %s104
    %p106 = scmp.eq.s32.totalorder %s17, 0
    %p107 = por %p105, %p106
    %s109 = sadd.s32 %s108, 1
    %p112 = scmp.eq.s32.totalorder %s11, 1
    %p113 = scmp.ne.s32.totalorder %s108, %s110
    %p114 = scmp.eq.s32.totalorder %s11, 0
    %p115 = por %p113, %p114
    %p116 = scmp.ne.s32.totalorder %s108, %s110
    %p117 = scmp.eq.s32.totalorder %s16, 1
    %p118 = por %p116, %p117
    %p119 = scmp.ne.s32.totalorder %s110, %s111
    %p120 = scmp.eq.s32.totalorder %s16, 0
    %p121 = por %p119, %p120
    %p122 = scmp.ne.s32.totalorder %s110, %s111
    %p123 = scmp.eq.s32.totalorder %s17, 1
    %p124 = por %p122, %p123
    %p126 = scmp.ne.s32.totalorder %s111, %s125
    %p127 = scmp.eq.s32.totalorder %s17, 0
    %p128 = por %p126, %p127
    %s129 = ssub.s32 %s11, %s18
    %p130 = scmp.eq.s32.totalorder %s129, 0
    %s132 = sadd.s32 %s131, 1
    %s133 = scalar_select %p130, %s131, %s132
    %p136 = pneg %p130
    %p137 = scmp.eq.s32.totalorder %s11, 1
    %p138 = por %p136, %p137
    %p139 = scmp.ne.s32.totalorder %s131, %s134
    %p140 = scmp.eq.s32.totalorder %s11, 0
    %p141 = por %p139, %p140
    %p142 = scmp.ne.s32.totalorder %s131, %s134
    %p143 = scmp.eq.s32.totalorder %s16, 1
    %p144 = por %p142, %p143
    %p145 = scmp.ne.s32.totalorder %s134, %s135
    %p146 = scmp.eq.s32.totalorder %s16, 0
    %p147 = por %p145, %p146
    %p148 = scmp.ne.s32.totalorder %s134, %s135
    %p149 = scmp.eq.s32.totalorder %s17, 1
    %p150 = por %p148, %p149
    %p152 = scmp.ne.s32.totalorder %s135, %s151
    %p153 = scmp.eq.s32.totalorder %s17, 0
    %p154 = por %p152, %p153
    %p155 = scmp.le.s32.totalorder 1, %s11
    %p156 = scmp.lt.s32.totalorder %s11, 3
    %p157 = pnand %p155, %p156
    %p158 = pneg %p157
    // Predicated region
    $region9: #{shared_adapter.1} parent=5 // pred_check
      _
    $region10: #{shared_adapter.1} parent=5 // pred_check_branch
      %160 = sbr.rel (%p157) target = $region12
    $region11: #{shared_adapter.1} parent=5 // pred_region
      %s161 = ssub.s32 %s11, 1
      // Predicated region
      $region13: #{shared_adapter.1} parent=11 // pred_check
        %p162 = pneg %p58
      $region14: #{shared_adapter.1} parent=11 // pred_check_branch
        %164 = sbr.rel (%p162) target = $region16
      $region15: #{shared_adapter.1} parent=11 // pred_region
        _
      $region16: #{shared_adapter.1} parent=11 // pred_fallthru
        _
      // Predicated region
      $region17: #{shared_adapter.1} parent=11 // pred_check
        %p165 = pneg %p79
      $region18: #{shared_adapter.1} parent=11 // pred_check_branch
        %167 = sbr.rel (%p165) target = $region20
      $region19: #{shared_adapter.1} parent=11 // pred_region
        _
      $region20: #{shared_adapter.1} parent=11 // pred_fallthru
        _
      // Predicated region
      $region21: #{shared_adapter.1} parent=11 // pred_check
        %p168 = pneg %p100
      $region22: #{shared_adapter.1} parent=11 // pred_check_branch
        %170 = sbr.rel (%p168) target = $region24
      $region23: #{shared_adapter.1} parent=11 // pred_region
        _
      $region24: #{shared_adapter.1} parent=11 // pred_fallthru
        _
      // Predicated region
      $region25: #{shared_adapter.1} parent=11 // pred_check
        %p171 = pneg %p121
      $region26: #{shared_adapter.1} parent=11 // pred_check_branch
        %173 = sbr.rel (%p171) target = $region28
      $region27: #{shared_adapter.1} parent=11 // pred_region
        _
      $region28: #{shared_adapter.1} parent=11 // pred_fallthru
        _
    $region12: #{shared_adapter.1} parent=5 // pred_fallthru
      _
    %p174 = scmp.lt.s32.totalorder %s11, 2
    // Predicated region
    $region29: #{shared_adapter.1} parent=5 // pred_check
      %p175 = pneg %p174
    $region30: #{shared_adapter.1} parent=5 // pred_check_branch
      %177 = sbr.rel (%p175) target = $region32
    $region31: #{shared_adapter.1} parent=5 // pred_region
      // Predicated region
      $region33: #{shared_adapter.1} parent=31 // pred_check
        %p178 = pneg %p31
      $region34: #{shared_adapter.1} parent=31 // pred_check_branch
        %180 = sbr.rel (%p178) target = $region36
      $region35: #{shared_adapter.1} parent=31 // pred_region
        %p181 = scmp.lt.s32.totalorder %s11, 1
        %s182 = scalar_select %p181, %s11, 1
        %s183 = smul.addr %s182, 8
        %s184 = scalar_lea.vmem %s0, %s183
      $region36: #{shared_adapter.1} parent=31 // pred_fallthru
        _
    $region32: #{shared_adapter.1} parent=5 // pred_fallthru
      _
    %p185 = scmp.le.s32.totalorder 1, %s11
    %p186 = scmp.lt.s32.totalorder %s11, 3
    %p187 = pnand %p185, %p186
    %p188 = pneg %p187
    // Predicated region
    $region37: #{shared_adapter.1} parent=5 // pred_check
      _
    $region38: #{shared_adapter.1} parent=5 // pred_check_branch
      %190 = sbr.rel (%p187) target = $region40
    $region39: #{shared_adapter.1} parent=5 // pred_region
      %s191 = ssub.s32 %s11, 1
      %p192 = scmp.lt.s32.totalorder %s16, 1
      %s193 = scalar_select %p192, %s16, 1
      %s194 = smul.addr %s193, 8
      %s195 = scalar_lea.vmem %s0, %s194
      %p196 = pneg %p37
      %p197 = pneg %p34
      %p198 = pneg %p58
      %p199 = pneg %p55
      %p200 = pneg %p79
      %p201 = pneg %p76
      %p202 = pneg %p100
      %p203 = pneg %p97
      %p204 = pneg %p121
      %p205 = pneg %p118
      %p206 = pneg %p147
      %p207 = pneg %p144
      %p208 = scmp.lt.s32.totalorder %s16, 1
      %s209 = scalar_select %p208, %s16, 1
      %s210 = smul.addr %s209, 8
      %s211 = scalar_lea.vmem %s5, %s210
      %p212 = scmp.lt.s32.totalorder %s16, 1
      %s213 = scalar_select %p212, %s16, 1
      %s214 = smul.addr %s213, 8
      %s215 = scalar_lea.vmem %s0, %s214
      %p216 = scmp.lt.s32.totalorder %s16, 1
      %s217 = scalar_select %p216, %s16, 1
      %s218 = smul.addr %s217, 8
      %s219 = scalar_lea.vmem %s5, %s218
      %v220 = vld [vmem:[%s215] sm:$0xff]
      %v221 = vld [vmem:[%s1] sm:$0xff]
      %v222 = vld [vmem:[%s1 + $0x8] sm:$0xff]
      %v223 = vld [vmem:[%s1 + $0x10] sm:$0xff]
      %v224 = vld [vmem:[%s1 + $0x18] sm:$0xff]
      %v225 = vld [vmem:[%s1 + $0x20] sm:$0xff]
      %v226 = vld [vmem:[%s1 + $0x28] sm:$0xff]
      %v227 = vld [vmem:[%s1 + $0x30] sm:$0xff]
      %v228 = vld [vmem:[%s1 + $0x38] sm:$0xff]
      %v229 = vld [vmem:[%s1 + $0x40] sm:$0xff]
      %v230 = vld [vmem:[%s1 + $0x48] sm:$0xff]
      %v231 = vld [vmem:[%s1 + $0x50] sm:$0xff]
      %v232 = vld [vmem:[%s1 + $0x58] sm:$0xff]
      %v233 = vld [vmem:[%s1 + $0x60] sm:$0xff]
      %v234 = vld [vmem:[%s1 + $0x68] sm:$0xff]
      %v235 = vld [vmem:[%s1 + $0x70] sm:$0xff]
      %v236 = vld [vmem:[%s1 + $0x78] sm:$0xff]
      %v237 = vld [vmem:[%s2] sm:$0x1]
      %v239 = vlaneseq
      %v240 = vshrl.u32 %v239, 7
      %v241 = vsub.s32 0, %v240
      %v242 = vrot.slane %v237, %v241
      %244 = vmatprep.subr.mxu0 0.0
      %245 = vmatpush1.xpose.msra.mxu0 %v221
      %246 = vmatprep.subr.mxu0 0.0
      %247 = vmatpush1.xpose.msra.mxu0 %v222
      %248 = vmatprep.subr.mxu0 0.0
      %249 = vmatpush1.xpose.msra.mxu0 %v223
      %250 = vmatprep.subr.mxu0 0.0
      %251 = vmatpush1.xpose.msra.mxu0 %v224
      %252 = vmatprep.subr.mxu0 0.0
      %253 = vmatpush1.xpose.msra.mxu0 %v225
      %254 = vmatprep.subr.mxu0 0.0
      %255 = vmatpush1.xpose.msra.mxu0 %v226
      %256 = vmatprep.subr.mxu0 0.0
      %257 = vmatpush1.xpose.msra.mxu0 %v227
      %258 = vmatprep.subr.mxu0 0.0
      %259 = vmatpush1.xpose.msra.mxu0 %v228
      %260 = vmatprep.subr.mxu0 0.0
      %261 = vmatpush1.xpose.msra.mxu0 %v229
      %262 = vmatprep.subr.mxu0 0.0
      %263 = vmatpush1.xpose.msra.mxu0 %v230
      %264 = vmatprep.subr.mxu0 0.0
      %265 = vmatpush1.xpose.msra.mxu0 %v231
      %266 = vmatprep.subr.mxu0 0.0
      %267 = vmatpush1.xpose.msra.mxu0 %v232
      %268 = vmatprep.subr.mxu0 0.0
      %269 = vmatpush1.xpose.msra.mxu0 %v233
      %270 = vmatprep.subr.mxu0 0.0
      %271 = vmatpush1.xpose.msra.mxu0 %v234
      %272 = vmatprep.subr.mxu0 0.0
      %273 = vmatpush1.xpose.msra.mxu0 %v235
      %274 = vmatprep.subr.mxu0 0.0
      %275 = vmatpush1.xpose.msra.mxu0 %v236
      %276 = vmatprep.subr.mxu0 0.0
      %277 = vmatpush1.xpose.msra.mxu0 0.0
      %278 = vmatprep.subr.mxu0 0.0
      %279 = vmatpush1.xpose.msra.mxu0 0.0
      %280 = vmatprep.subr.mxu0 0.0
      %281 = vmatpush1.xpose.msra.mxu0 0.0
      %282 = vmatprep.subr.mxu0 0.0
      %283 = vmatpush1.xpose.msra.mxu0 0.0
      %284 = vmatprep.subr.mxu0 0.0
      %285 = vmatpush1.xpose.msra.mxu0 0.0
      %286 = vmatprep.subr.mxu0 0.0
      %287 = vmatpush1.xpose.msra.mxu0 0.0
      %288 = vmatprep.subr.mxu0 0.0
      %289 = vmatpush1.xpose.msra.mxu0 0.0
      %290 = vmatprep.subr.mxu0 0.0
      %291 = vmatpush1.xpose.msra.mxu0 0.0
      %292 = vmatprep.subr.mxu0 0.0
      %293 = vmatpush1.xpose.msra.mxu0 0.0
      %294 = vmatprep.subr.mxu0 0.0
      %295 = vmatpush1.xpose.msra.mxu0 0.0
      %296 = vmatprep.subr.mxu0 0.0
      %297 = vmatpush1.xpose.msra.mxu0 0.0
      %298 = vmatprep.subr.mxu0 0.0
      %299 = vmatpush1.xpose.msra.mxu0 0.0
      %300 = vmatprep.subr.mxu0 0.0
      %301 = vmatpush1.xpose.msra.mxu0 0.0
      %302 = vmatprep.subr.mxu0 0.0
      %303 = vmatpush1.xpose.msra.mxu0 0.0
      %304 = vmatprep.subr.mxu0 0.0
      %305 = vmatpush1.xpose.msra.mxu0 0.0
      %306 = vmatprep.subr.mxu0 0.0
      %307 = vmatpush1.xpose.msra.mxu0 0.0
      %308 = vmatprep.mubr.f32.mxu0 0.0
      %309 = vmatmul.mubr.f32.gmra.mrb[0].mxu0 %v220
      %v310 = vpop.f32.mrb[0].mxu0
      %v311 = vadd.f32 %v242, %v310
      %v312 = vpop.f32.mrb[0].mxu0
      %313 = vdwg.mxu0
      %v314 = vld [vmem:[%s3] sm:$0xff]
      %v315 = vld [vmem:[%s3 + $0x8] sm:$0xff]
      %v316 = vld [vmem:[%s3 + $0x10] sm:$0xff]
      %v317 = vld [vmem:[%s3 + $0x18] sm:$0xff]
      %v318 = vld [vmem:[%s3 + $0x20] sm:$0xff]
      %v319 = vld [vmem:[%s3 + $0x28] sm:$0xff]
      %v320 = vld [vmem:[%s3 + $0x30] sm:$0xff]
      %v321 = vld [vmem:[%s3 + $0x38] sm:$0xff]
      %v322 = vld [vmem:[%s3 + $0x40] sm:$0xff]
      %v323 = vld [vmem:[%s3 + $0x48] sm:$0xff]
      %v324 = vld [vmem:[%s3 + $0x50] sm:$0xff]
      %v325 = vld [vmem:[%s3 + $0x58] sm:$0xff]
      %v326 = vld [vmem:[%s3 + $0x60] sm:$0xff]
      %v327 = vld [vmem:[%s3 + $0x68] sm:$0xff]
      %v328 = vld [vmem:[%s3 + $0x70] sm:$0xff]
      %v329 = vld [vmem:[%s3 + $0x78] sm:$0xff]
      %v330 = vld [vmem:[%s4] sm:$0x1]
      %v332 = vlaneseq
      %v333 = vshrl.u32 %v332, 7
      %v334 = vsub.s32 0, %v333
      %v335 = vrot.slane %v330, %v334
      %337 = vmatprep.subr.mxu0 0.0
      %338 = vmatpush1.xpose.msra.mxu0 %v314
      %339 = vmatprep.subr.mxu0 0.0
      %340 = vmatpush1.xpose.msra.mxu0 %v315
      %341 = vmatprep.subr.mxu0 0.0
      %342 = vmatpush1.xpose.msra.mxu0 %v316
      %343 = vmatprep.subr.mxu0 0.0
      %344 = vmatpush1.xpose.msra.mxu0 %v317
      %345 = vmatprep.subr.mxu0 0.0
      %346 = vmatpush1.xpose.msra.mxu0 %v318
      %347 = vmatprep.subr.mxu0 0.0
      %348 = vmatpush1.xpose.msra.mxu0 %v319
      %349 = vmatprep.subr.mxu0 0.0
      %350 = vmatpush1.xpose.msra.mxu0 %v320
      %351 = vmatprep.subr.mxu0 0.0
      %352 = vmatpush1.xpose.msra.mxu0 %v321
      %353 = vmatprep.subr.mxu0 0.0
      %354 = vmatpush1.xpose.msra.mxu0 %v322
      %355 = vmatprep.subr.mxu0 0.0
      %356 = vmatpush1.xpose.msra.mxu0 %v323
      %357 = vmatprep.subr.mxu0 0.0
      %358 = vmatpush1.xpose.msra.mxu0 %v324
      %359 = vmatprep.subr.mxu0 0.0
      %360 = vmatpush1.xpose.msra.mxu0 %v325
      %361 = vmatprep.subr.mxu0 0.0
      %362 = vmatpush1.xpose.msra.mxu0 %v326
      %363 = vmatprep.subr.mxu0 0.0
      %364 = vmatpush1.xpose.msra.mxu0 %v327
      %365 = vmatprep.subr.mxu0 0.0
      %366 = vmatpush1.xpose.msra.mxu0 %v328
      %367 = vmatprep.subr.mxu0 0.0
      %368 = vmatpush1.xpose.msra.mxu0 %v329
      %369 = vmatprep.subr.mxu0 0.0
      %370 = vmatpush1.xpose.msra.mxu0 0.0
      %371 = vmatprep.subr.mxu0 0.0
      %372 = vmatpush1.xpose.msra.mxu0 0.0
      %373 = vmatprep.subr.mxu0 0.0
      %374 = vmatpush1.xpose.msra.mxu0 0.0
      %375 = vmatprep.subr.mxu0 0.0
      %376 = vmatpush1.xpose.msra.mxu0 0.0
      %377 = vmatprep.subr.mxu0 0.0
      %378 = vmatpush1.xpose.msra.mxu0 0.0
      %379 = vmatprep.subr.mxu0 0.0
      %380 = vmatpush1.xpose.msra.mxu0 0.0
      %381 = vmatprep.subr.mxu0 0.0
      %382 = vmatpush1.xpose.msra.mxu0 0.0
      %383 = vmatprep.subr.mxu0 0.0
      %384 = vmatpush1.xpose.msra.mxu0 0.0
      %385 = vmatprep.subr.mxu0 0.0
      %386 = vmatpush1.xpose.msra.mxu0 0.0
      %387 = vmatprep.subr.mxu0 0.0
      %388 = vmatpush1.xpose.msra.mxu0 0.0
      %389 = vmatprep.subr.mxu0 0.0
      %390 = vmatpush1.xpose.msra.mxu0 0.0
      %391 = vmatprep.subr.mxu0 0.0
      %392 = vmatpush1.xpose.msra.mxu0 0.0
      %393 = vmatprep.subr.mxu0 0.0
      %394 = vmatpush1.xpose.msra.mxu0 0.0
      %395 = vmatprep.subr.mxu0 0.0
      %396 = vmatpush1.xpose.msra.mxu0 0.0
      %397 = vmatprep.subr.mxu0 0.0
      %398 = vmatpush1.xpose.msra.mxu0 0.0
      %399 = vmatprep.subr.mxu0 0.0
      %400 = vmatpush1.xpose.msra.mxu0 0.0
      %401 = vmatprep.mubr.f32.mxu0 0.0
      %402 = vmatmul.mubr.f32.gmra.mrb[0].mxu0 %v311
      %v403 = vpop.f32.mrb[0].mxu0
      %v404 = vadd.f32 %v335, %v403
      %v405 = vpop.f32.mrb[0].mxu0
      %406 = vdwg.mxu0
      %407 = vst [vmem:[%s219] sm:$0xff] %v404
      %p408 = scmp.lt.s32.totalorder %s16, 1
      %s409 = scalar_select %p408, %s16, 1
      %s410 = smul.addr %s409, 8
      %s411 = scalar_lea.vmem %s5, %s410
      // Predicated region
      $region41: #{shared_adapter.1} parent=39 // pred_check
        %p412 = pneg %p144
      $region42: #{shared_adapter.1} parent=39 // pred_check_branch
        %414 = sbr.rel (%p412) target = $region44
      $region43: #{shared_adapter.1} parent=39 // pred_region
        _
      $region44: #{shared_adapter.1} parent=39 // pred_fallthru
        _
    $region40: #{shared_adapter.1} parent=5 // pred_fallthru
      _
    %p415 = scmp.le.s32.totalorder 2, %s11
    // Predicated region
    $region45: #{shared_adapter.1} parent=5 // pred_check
      %p416 = pneg %p415
    $region46: #{shared_adapter.1} parent=5 // pred_check_branch
      %418 = sbr.rel (%p416) target = $region48
    $region47: #{shared_adapter.1} parent=5 // pred_region
      %s419 = ssub.s32 %s11, 2
      // Predicated region
      $region49: #{shared_adapter.1} parent=47 // pred_check
        %p420 = pneg %p150
      $region50: #{shared_adapter.1} parent=47 // pred_check_branch
        %422 = sbr.rel (%p420) target = $region52
      $region51: #{shared_adapter.1} parent=47 // pred_region
        %p423 = scmp.lt.s32.totalorder %s17, 1
        %s424 = scalar_select %p423, %s17, 1
        %s425 = smul.addr %s424, 8
        %s426 = scalar_lea.vmem %s5, %s425
      $region52: #{shared_adapter.1} parent=47 // pred_fallthru
        _
    $region48: #{shared_adapter.1} parent=5 // pred_fallthru
      _
  $region6: #{shared_adapter.1} parent=0 // loop_footer
    %s15 = sadd.s32 1, %s11
  $region7: #{shared_adapter.1} parent=0 // loop_footer_branch
    %10 = sbr.rel target = $region3
  $region8: #{shared_adapter.1} parent=0 // loop_exit
    _

</llo_original>
